<compile_context>
chip_gen: v7x
topology: tpu7x:2x2x1
jax: 0.10.0
libtpu: 0.0.40
codegen_flags: <defaults>
</compile_context>

<pallas_src>
import functools

import jax
import jax.numpy as jnp
from jax.experimental import pallas as pl
from jax.experimental.pallas import tpu as pltpu


def _round_up(x, m):
    return ((x + m - 1) // m) * m


def _activation_dtype():
    """bf16 elementwise (bias+ReLU) only pays off on chips with a bf16 VPU."""
    try:
        kind = jax.devices()[0].device_kind.lower()
    except Exception:
        return jnp.float32
    if "v6" in kind or "v7" in kind:
        return jnp.bfloat16
    return jnp.float32  # v5e and older: no bf16 VALU, stay in f32


def _vmem_limit_bytes(default=64 * 1024 * 1024):
    """Per-generation scoped-VMEM budget with headroom for compiler scratch."""
    try:
        info = pltpu.get_tpu_info()
        cap = int(getattr(info, "vmem_capacity_bytes", default))
    except Exception:
        cap = default
    return (cap * 3) // 4


def mlp_kernel(x_ref, w1_ref, b1_ref, w2_ref, b2_ref, w3_ref, b3_ref, o_ref,
               *, act_dtype):
    # fc1 + ReLU  (bf16 MXU inputs, f32 accumulate, act_dtype elementwise)
    h1 = jnp.dot(x_ref[...].astype(jnp.bfloat16), w1_ref[...],
                 preferred_element_type=jnp.float32)
    h1 = jnp.maximum((h1 + b1_ref[...]).astype(act_dtype), 0.0)
    # fc2 + ReLU
    h2 = jnp.dot(h1.astype(jnp.bfloat16), w2_ref[...],
                 preferred_element_type=jnp.float32)
    h2 = jnp.maximum((h2 + b2_ref[...]).astype(act_dtype), 0.0)
    # fc3 (no activation); output width is lane-dense (multiple of 128)
    out = jnp.dot(h2.astype(jnp.bfloat16), w3_ref[...],
                  preferred_element_type=jnp.float32) + b3_ref[...]
    o_ref[...] = out.astype(o_ref.dtype)


def prepare_mlp_params(w1, b1, w2, b2, w3, b3):
    """One-time parameter prep (hoisted out of the per-call path):
       * cast weights to bf16 (MXU inputs), keep biases f32,
       * zero-pad fc3's output width to a multiple of 128 (lane-dense store)."""
    out_dim = w3.shape[1]
    out_pad = _round_up(out_dim, 128)
    if out_pad != out_dim:
        w3 = jnp.pad(w3, ((0, 0), (0, out_pad - out_dim)))
        b3 = jnp.pad(b3, ((0, 0), (0, out_pad - out_dim)))
    params = (w1.astype(jnp.bfloat16), b1.astype(jnp.float32),
              w2.astype(jnp.bfloat16), b2.astype(jnp.float32),
              w3.astype(jnp.bfloat16), b3.astype(jnp.float32))
    return params, out_dim


def mlp_forward(x, prepared, *, batch_tile=512, out_dtype=jnp.float32):
    """x: (batch, in_dim) f32.  prepared: output of prepare_mlp_params."""
    params, out_dim = prepared
    w1, b1, w2, b2, w3, b3 = params
    batch, in_dim = x.shape
    hidden_dim = w1.shape[1]
    out_pad = w3.shape[1]

    # Adaptive batch tile: 16-row minimum (bf16 sublane packing), up to
    # batch_tile rows for large batches.  Only x needs per-call padding.
    tb = min(batch_tile, _round_up(batch, 16))
    padded_batch = _round_up(batch, tb)
    if padded_batch != batch:
        x = jnp.pad(x, ((0, padded_batch - batch), (0, 0)))
    grid = (padded_batch // tb,)

    # Advisory cost estimate (per padded problem).
    flops = 2 * padded_batch * (in_dim * hidden_dim
                                + hidden_dim * hidden_dim
                                + hidden_dim * out_pad)
    bytes_accessed = (x.size * x.dtype.itemsize
                      + sum(int(p.size) * p.dtype.itemsize for p in params)
                      + padded_batch * out_pad * jnp.dtype(out_dtype).itemsize)

    # Weights / biases: constant index_map -> resident across all grid steps;
    # single-buffered (a second pipeline buffer would be pure VMEM waste).
    def resident(shape):
        return pl.BlockSpec(shape, lambda i: (0, 0),
                            pipeline_mode=pl.Buffered(1))

    kernel = functools.partial(mlp_kernel, act_dtype=_activation_dtype())

    out = pl.pallas_call(
        kernel,
        out_shape=jax.ShapeDtypeStruct((padded_batch, out_pad), out_dtype),
        grid=grid,
        in_specs=[
            # x: one batch tile per grid step (double-buffered by the pipeline)
            pl.BlockSpec((tb, in_dim), lambda i: (i, 0)),
            resident(w1.shape), resident(b1.shape),
            resident(w2.shape), resident(b2.shape),
            resident(w3.shape), resident(b3.shape),
        ],
        out_specs=pl.BlockSpec((tb, out_pad), lambda i: (i, 0)),
        compiler_params=pltpu.CompilerParams(
            dimension_semantics=("parallel",),
            vmem_limit_bytes=_vmem_limit_bytes(),
        ),
        cost_estimate=pl.CostEstimate(
            flops=flops, transcendentals=0, bytes_accessed=bytes_accessed),
    )(x, w1, b1, w2, b2, w3, b3)

    # Strip batch/output padding.
    return out[:batch, :out_dim]
    # TODO(synk): add a K-tiled accumulator grid axis (marked "arbitrary",
    # placed last, f32 VMEM accumulator) for fc2 once hidden_dim grows large
    # enough that W2 no longer fits resident in v7x's 64 MiB VMEM.


def init_linear(key, in_dim, out_dim):
    # PyTorch nn.Linear default init: U(-1/sqrt(in_dim), 1/sqrt(in_dim))
    kw, kb = jax.random.split(key)
    bound = 1.0 / jnp.sqrt(jnp.float32(in_dim))
    # stored as (in_dim, out_dim) so the kernel does x @ W
    w = jax.random.uniform(kw, (in_dim, out_dim), jnp.float32, -bound, bound)
    b = jax.random.uniform(kb, (1, out_dim), jnp.float32, -bound, bound)
    return w, b


if __name__ == "__main__":
    input_dim, hidden_dim, output_dim = 32, 256, 8
    batch = 8

    key = jax.random.PRNGKey(0)
    k1, k2, k3, kx = jax.random.split(key, 4)
    w1, b1 = init_linear(k1, input_dim, hidden_dim)
    w2, b2 = init_linear(k2, hidden_dim, hidden_dim)
    w3, b3 = init_linear(k3, hidden_dim, output_dim)

    # One-time parameter preparation (bf16 weights, lane-dense padded fc3).
    prepared = prepare_mlp_params(w1, b1, w2, b2, w3, b3)

    x = jax.random.normal(kx, (batch, input_dim), jnp.float32)

    out = jax.block_until_ready(mlp_forward(x, prepared))

    # Pure-JAX reference on the same bf16-rounded weights; the remaining
    # difference is the bf16 rounding of the MXU activation inputs, hence the
    # loosened tolerance.
    w1r = w1.astype(jnp.bfloat16).astype(jnp.float32)
    w2r = w2.astype(jnp.bfloat16).astype(jnp.float32)
    w3r = w3.astype(jnp.bfloat16).astype(jnp.float32)
    ref = jnp.maximum(x @ w1r + b1, 0.0)
    ref = jnp.maximum(ref @ w2r + b2, 0.0)
    ref = ref @ w3r + b3

    assert out.shape == (batch, output_dim), out.shape
    assert jnp.allclose(out, ref, atol=2e-2, rtol=2e-2), (
        float(jnp.max(jnp.abs(out - ref))))

    print("KERNEL_OK")
</pallas_src>

<mosaic_0001>
module attributes {stable_mosaic.version = 11 : i64} {
  func.func @mlp_kernel(%arg0: i32, %arg1: memref<16x32xf32, #tpu.memory_space<vmem>>, %arg2: memref<32x256xbf16, #tpu.memory_space<vmem>>, %arg3: memref<1x256xf32, #tpu.memory_space<vmem>>, %arg4: memref<256x256xbf16, #tpu.memory_space<vmem>>, %arg5: memref<1x256xf32, #tpu.memory_space<vmem>>, %arg6: memref<256x128xbf16, #tpu.memory_space<vmem>>, %arg7: memref<1x128xf32, #tpu.memory_space<vmem>>, %arg8: memref<16x128xf32, #tpu.memory_space<vmem>>) attributes {dimension_semantics = [#tpu.dimension_semantics<parallel>], iteration_bounds = array<i64: 1>, scalar_prefetch = 0 : i64, scratch_operands = 0 : i64, tpu.core_type = #tpu.core_type<tc>, window_params = [{transform_indices = @transform_0, window_bounds = array<i64: 16, 32>}, {pipeline_mode = #tpu.pipeline_mode<synchronous>, transform_indices = @transform_1, window_bounds = array<i64: 32, 256>}, {pipeline_mode = #tpu.pipeline_mode<synchronous>, transform_indices = @transform_2, window_bounds = array<i64: 1, 256>}, {pipeline_mode = #tpu.pipeline_mode<synchronous>, transform_indices = @transform_3, window_bounds = array<i64: 256, 256>}, {pipeline_mode = #tpu.pipeline_mode<synchronous>, transform_indices = @transform_4, window_bounds = array<i64: 1, 256>}, {pipeline_mode = #tpu.pipeline_mode<synchronous>, transform_indices = @transform_5, window_bounds = array<i64: 256, 128>}, {pipeline_mode = #tpu.pipeline_mode<synchronous>, transform_indices = @transform_6, window_bounds = array<i64: 1, 128>}, {transform_indices = @transform_7, window_bounds = array<i64: 16, 128>}]} {
    %c0 = arith.constant 0 : index
    %c0_0 = arith.constant 0 : index
    %0 = vector.load %arg1[%c0, %c0_0] : memref<16x32xf32, #tpu.memory_space<vmem>>, vector<16x32xf32>
    %1 = arith.truncf %0 : vector<16x32xf32> to vector<16x32xbf16>
    %c0_1 = arith.constant 0 : index
    %c0_2 = arith.constant 0 : index
    %2 = vector.load %arg2[%c0_1, %c0_2] : memref<32x256xbf16, #tpu.memory_space<vmem>>, vector<32x256xbf16>
    %cst = arith.constant dense<0.000000e+00> : vector<16x256xf32>
    %3 = tpu.matmul %1, %2, %cst {dimension_numbers = #tpu.dot_dimension_numbers<[1], [0], [0], [1], [0, 0, 1, 1], [], []>} : vector<16x32xbf16>, vector<32x256xbf16>, vector<16x256xf32> -> vector<16x256xf32>
    %c0_3 = arith.constant 0 : index
    %c0_4 = arith.constant 0 : index
    %4 = vector.load %arg3[%c0_3, %c0_4] : memref<1x256xf32, #tpu.memory_space<vmem>>, vector<1x256xf32>
    %5 = vector.broadcast %4 : vector<1x256xf32> to vector<16x256xf32>
    %6 = arith.addf %3, %5 : vector<16x256xf32>
    %cst_5 = arith.constant 0.000000e+00 : f32
    %7 = vector.broadcast %cst_5 : f32 to vector<16x256xf32>
    %8 = arith.maximumf %6, %7 : vector<16x256xf32>
    %9 = arith.truncf %8 : vector<16x256xf32> to vector<16x256xbf16>
    %c0_6 = arith.constant 0 : index
    %c0_7 = arith.constant 0 : index
    %10 = vector.load %arg4[%c0_6, %c0_7] : memref<256x256xbf16, #tpu.memory_space<vmem>>, vector<256x256xbf16>
    %cst_8 = arith.constant dense<0.000000e+00> : vector<16x256xf32>
    %11 = tpu.matmul %9, %10, %cst_8 {dimension_numbers = #tpu.dot_dimension_numbers<[1], [0], [0], [1], [0, 0, 1, 1], [], []>} : vector<16x256xbf16>, vector<256x256xbf16>, vector<16x256xf32> -> vector<16x256xf32>
    %c0_9 = arith.constant 0 : index
    %c0_10 = arith.constant 0 : index
    %12 = vector.load %arg5[%c0_9, %c0_10] : memref<1x256xf32, #tpu.memory_space<vmem>>, vector<1x256xf32>
    %13 = vector.broadcast %12 : vector<1x256xf32> to vector<16x256xf32>
    %14 = arith.addf %11, %13 : vector<16x256xf32>
    %cst_11 = arith.constant 0.000000e+00 : f32
    %15 = vector.broadcast %cst_11 : f32 to vector<16x256xf32>
    %16 = arith.maximumf %14, %15 : vector<16x256xf32>
    %17 = arith.truncf %16 : vector<16x256xf32> to vector<16x256xbf16>
    %c0_12 = arith.constant 0 : index
    %c0_13 = arith.constant 0 : index
    %18 = vector.load %arg6[%c0_12, %c0_13] : memref<256x128xbf16, #tpu.memory_space<vmem>>, vector<256x128xbf16>
    %cst_14 = arith.constant dense<0.000000e+00> : vector<16x128xf32>
    %19 = tpu.matmul %17, %18, %cst_14 {dimension_numbers = #tpu.dot_dimension_numbers<[1], [0], [0], [1], [0, 0, 1, 1], [], []>} : vector<16x256xbf16>, vector<256x128xbf16>, vector<16x128xf32> -> vector<16x128xf32>
    %c0_15 = arith.constant 0 : index
    %c0_16 = arith.constant 0 : index
    %20 = vector.load %arg7[%c0_15, %c0_16] : memref<1x128xf32, #tpu.memory_space<vmem>>, vector<1x128xf32>
    %21 = vector.broadcast %20 : vector<1x128xf32> to vector<16x128xf32>
    %22 = arith.addf %19, %21 : vector<16x128xf32>
    %c0_17 = arith.constant 0 : index
    %c0_18 = arith.constant 0 : index
    %23 = vector.load %arg8[%c0_17, %c0_18] : memref<16x128xf32, #tpu.memory_space<vmem>>, vector<16x128xf32>
    tpu.vector_store %arg8[%c0_17, %c0_18], %22 {strides = array<i32>} : memref<16x128xf32, #tpu.memory_space<vmem>>, vector<16x128xf32>,
    return
  }
  func.func @transform_0(%arg0: i32) -> (i32, i32) {
    %c0_i32 = arith.constant 0 : i32
    %c0_i32_0 = arith.constant 0 : i32
    return %arg0, %c0_i32 : i32, i32
  }
  func.func @transform_1(%arg0: i32) -> (i32, i32) {
    %c0_i32 = arith.constant 0 : i32
    %c0_i32_0 = arith.constant 0 : i32
    %c0_i32_1 = arith.constant 0 : i32
    return %c0_i32, %c0_i32_0 : i32, i32
  }
  func.func @transform_2(%arg0: i32) -> (i32, i32) {
    %c0_i32 = arith.constant 0 : i32
    %c0_i32_0 = arith.constant 0 : i32
    %c0_i32_1 = arith.constant 0 : i32
    return %c0_i32, %c0_i32_0 : i32, i32
  }
  func.func @transform_3(%arg0: i32) -> (i32, i32) {
    %c0_i32 = arith.constant 0 : i32
    %c0_i32_0 = arith.constant 0 : i32
    %c0_i32_1 = arith.constant 0 : i32
    return %c0_i32, %c0_i32_0 : i32, i32
  }
  func.func @transform_4(%arg0: i32) -> (i32, i32) {
    %c0_i32 = arith.constant 0 : i32
    %c0_i32_0 = arith.constant 0 : i32
    %c0_i32_1 = arith.constant 0 : i32
    return %c0_i32, %c0_i32_0 : i32, i32
  }
  func.func @transform_5(%arg0: i32) -> (i32, i32) {
    %c0_i32 = arith.constant 0 : i32
    %c0_i32_0 = arith.constant 0 : i32
    %c0_i32_1 = arith.constant 0 : i32
    return %c0_i32, %c0_i32_0 : i32, i32
  }
  func.func @transform_6(%arg0: i32) -> (i32, i32) {
    %c0_i32 = arith.constant 0 : i32
    %c0_i32_0 = arith.constant 0 : i32
    %c0_i32_1 = arith.constant 0 : i32
    return %c0_i32, %c0_i32_0 : i32, i32
  }
  func.func @transform_7(%arg0: i32) -> (i32, i32) {
    %c0_i32 = arith.constant 0 : i32
    %c0_i32_0 = arith.constant 0 : i32
    return %arg0, %c0_i32 : i32, i32
  }
}

</mosaic_0001>

<llo_original>
// kernel: tpu_custom_call.1
$region0: #{tpu_custom_call.1}
  #allocation0 [shape = 'u32[]', space=smem, size = 0x4, offset = 0x4, fixed_abs, tag = 'smem constant byte address 0x4 - core index']
  #allocation1 [shape = 'u32[144,128]{1,0:T(1,128)}', space=vmem, size = 0x12000, scoped, tag = 'internal scratch']
  %s0 = inlined_call_operand.hbm [shape: f32[16,32], index: 0, kind: input, shape index: {}]
  %s1 = inlined_call_operand.hbm [shape: bf16[32,256], index: 1, kind: input, shape index: {}]
  %s2 = inlined_call_operand.vmem [shape: f32[1,256], index: 2, kind: input, shape index: {}]
  %s3 = inlined_call_operand.hbm [shape: bf16[256,256], index: 3, kind: input, shape index: {}]
  %s4 = inlined_call_operand.vmem [shape: f32[1,256], index: 4, kind: input, shape index: {}]
  %s5 = inlined_call_operand.hbm [shape: bf16[256,128], index: 5, kind: input, shape index: {}]
  %s6 = inlined_call_operand.vmem [shape: f32[1,128], index: 6, kind: input, shape index: {}]
  %s7 = inlined_call_operand.hbm [shape: f32[16,128], index: 7, kind: output, shape index: {}]
  %s8 = sld [smem:[#allocation0]]
  $region54: #{tpu_custom_call.1} parent=0
    _
  %s10 = ssub.s32 1, %s8
  %s11 = scalar_select 0, %s10, %s8
  $region1: #{tpu_custom_call.1} parent=0
    #allocation2 [shape = 'u8[8192]{0}', space=vmem, size = 0x2000, scoped, tag = 'input window, operand 0, single buffered']
    #allocation3 [shape = 's32[1]{0}', space=sflag, size = 0x4, scoped, tag = 'scoped memory for tpu_custom_call.1']
    #allocation4 [shape = 's32[1]{0}', space=sflag, size = 0x4, scoped, tag = 'scoped memory for tpu_custom_call.1']
    #allocation5 [shape = 'u8[16384]{0}', space=vmem, size = 0x4000, scoped, tag = 'input window, operand 1, single buffered']
    #allocation6 [shape = 's32[1]{0}', space=sflag, size = 0x4, scoped, tag = 'scoped memory for tpu_custom_call.1']
    #allocation7 [shape = 'u8[131072]{0}', space=vmem, size = 0x20000, scoped, tag = 'input window, operand 3, single buffered']
    #allocation8 [shape = 'u8[65536]{0}', space=vmem, size = 0x10000, scoped, tag = 'input window, operand 5, single buffered']
    #allocation9 [shape = 's32[1]{0}', space=sflag, size = 0x4, scoped, tag = 'scoped memory for tpu_custom_call.1']
    #allocation10 [shape = 'u8[8192]{0}', space=vmem, size = 0x2000, scoped, tag = 'output window, operand 0, single buffered']
    %12 = vsyncpa [#allocation3], 0
    %13 = vsyncpa [#allocation6], 0
    %14 = vsyncpa [#allocation9], 0
    %15 = vsyncpa [#allocation4], 0
    // Predicated region
    $region2: #{tpu_custom_call.1} parent=1 // pred_check
      _
    $region3: #{tpu_custom_call.1} parent=1 // pred_check_branch
      %17 = sbr.rel (0) target = $region5
    $region4: #{tpu_custom_call.1} parent=1 // pred_region
      %s19 = ssub.s32 256, 256
      %20 = vsyncadd [#allocation3], %s19
      %s21 = sshll.u32 [#allocation2], 4
      %s22 = int_to_ptr.vmem [resolvable:$true] %s21
      %27 = dma.hbm_to_vmem [thread:$0]  %s0, 256, %s22, [#allocation3], 128, 128, 8
    $region5: #{tpu_custom_call.1} parent=1 // pred_fallthru
      _
    // Predicated region
    $region6: #{tpu_custom_call.1} parent=1 // pred_check
      _
    $region7: #{tpu_custom_call.1} parent=1 // pred_check_branch
      %29 = sbr.rel (0) target = $region9
    $region8: #{tpu_custom_call.1} parent=1 // pred_region
      %s31 = ssub.s32 512, 512
      %32 = vsyncadd [#allocation6], %s31
      %s33 = sshll.u32 [#allocation5], 4
      %s34 = int_to_ptr.vmem [resolvable:$true] %s33
      %39 = dma.hbm_to_vmem [thread:$0]  %s1, 512, %s34, [#allocation6], 128, 128, 8
    $region9: #{tpu_custom_call.1} parent=1 // pred_fallthru
      _
    // Predicated region
    $region10: #{tpu_custom_call.1} parent=1 // pred_check
      _
    $region11: #{tpu_custom_call.1} parent=1 // pred_check_branch
      %41 = sbr.rel (0) target = $region13
    $region12: #{tpu_custom_call.1} parent=1 // pred_region
      _
    $region13: #{tpu_custom_call.1} parent=1 // pred_fallthru
      _
    // Predicated region
    $region14: #{tpu_custom_call.1} parent=1 // pred_check
      _
    $region15: #{tpu_custom_call.1} parent=1 // pred_check_branch
      %43 = sbr.rel (0) target = $region17
    $region16: #{tpu_custom_call.1} parent=1 // pred_region
      %s45 = ssub.s32 4096, 4096
      %46 = vsyncadd [#allocation6], %s45
      %s47 = sshll.u32 [#allocation7], 4
      %s48 = int_to_ptr.vmem [resolvable:$true] %s47
      %53 = dma.hbm_to_vmem [thread:$0]  %s3, 4096, %s48, [#allocation6], 128, 128, 8
    $region17: #{tpu_custom_call.1} parent=1 // pred_fallthru
      _
    // Predicated region
    $region18: #{tpu_custom_call.1} parent=1 // pred_check
      _
    $region19: #{tpu_custom_call.1} parent=1 // pred_check_branch
      %55 = sbr.rel (0) target = $region21
    $region20: #{tpu_custom_call.1} parent=1 // pred_region
      _
    $region21: #{tpu_custom_call.1} parent=1 // pred_fallthru
      _
    // Predicated region
    $region22: #{tpu_custom_call.1} parent=1 // pred_check
      _
    $region23: #{tpu_custom_call.1} parent=1 // pred_check_branch
      %57 = sbr.rel (0) target = $region25
    $region24: #{tpu_custom_call.1} parent=1 // pred_region
      %s59 = ssub.s32 2048, 2048
      %60 = vsyncadd [#allocation9], %s59
      %s61 = sshll.u32 [#allocation8], 4
      %s62 = int_to_ptr.vmem [resolvable:$true] %s61
      %67 = dma.hbm_to_vmem [thread:$0]  %s5, 2048, %s62, [#allocation9], 64, 64, 4
    $region25: #{tpu_custom_call.1} parent=1 // pred_fallthru
      _
    // Predicated region
    $region26: #{tpu_custom_call.1} parent=1 // pred_check
      _
    $region27: #{tpu_custom_call.1} parent=1 // pred_check_branch
      %69 = sbr.rel (0) target = $region29
    $region28: #{tpu_custom_call.1} parent=1 // pred_region
      _
    $region29: #{tpu_custom_call.1} parent=1 // pred_fallthru
      _
    // Predicated region
    $region30: #{tpu_custom_call.1} parent=1 // pred_check
      _
    $region31: #{tpu_custom_call.1} parent=1 // pred_check_branch
      %71 = sbr.rel (0) target = $region33
    $region32: #{tpu_custom_call.1} parent=1 // pred_region
      %72 = dma.done [#allocation3], 256
    $region33: #{tpu_custom_call.1} parent=1 // pred_fallthru
      _
    // Predicated region
    $region34: #{tpu_custom_call.1} parent=1 // pred_check
      _
    $region35: #{tpu_custom_call.1} parent=1 // pred_check_branch
      %74 = sbr.rel (0) target = $region37
    $region36: #{tpu_custom_call.1} parent=1 // pred_region
      %75 = dma.done [#allocation6], 512
    $region37: #{tpu_custom_call.1} parent=1 // pred_fallthru
      _
    // Predicated region
    $region38: #{tpu_custom_call.1} parent=1 // pred_check
      _
    $region39: #{tpu_custom_call.1} parent=1 // pred_check_branch
      %77 = sbr.rel (0) target = $region41
    $region40: #{tpu_custom_call.1} parent=1 // pred_region
      %78 = dma.done [#allocation6], 4096
    $region41: #{tpu_custom_call.1} parent=1 // pred_fallthru
      _
    // Predicated region
    $region42: #{tpu_custom_call.1} parent=1 // pred_check
      _
    $region43: #{tpu_custom_call.1} parent=1 // pred_check_branch
      %80 = sbr.rel (0) target = $region45
    $region44: #{tpu_custom_call.1} parent=1 // pred_region
      %81 = dma.done [#allocation9], 2048
    $region45: #{tpu_custom_call.1} parent=1 // pred_fallthru
      _
    %v83 = vld [vmem:[#allocation2] sm:$0xff]
    %v84 = vld [vmem:[#allocation2 + $0x8] sm:$0xff]
    %v85 = vpack.c.bf16 %v84, %v83
    %v86 = vld [vmem:[#allocation5] sm:$0xff]
    %v87 = vld [vmem:[#allocation5 + $0x8] sm:$0xff]
    %v88 = vld [vmem:[#allocation5 + $0x10] sm:$0xff]
    %v89 = vld [vmem:[#allocation5 + $0x18] sm:$0xff]
    %v90 = vld [vmem:[%s2] sm:$0x3]
    %v92 = vlaneseq
    %v93 = vshrl.u32 %v92, 7
    %v94 = vsub.s32 0, %v93
    %v95 = vrot.slane %v90, %v94
    %v96 = vlaneseq
    %v97 = vshrl.u32 %v96, 7
    %v98 = vsub.s32 1, %v97
    %v99 = vrot.slane %v90, %v98
    %v106 = vunpack.c.l.b16 %v86
    %v107 = vunpack.c.h.b16 %v86
    %v108 = vunpack.c.l.b16 %v87
    %v109 = vunpack.c.h.b16 %v87
    %v110 = vunpack.c.l.b16 %v88
    %v111 = vunpack.c.h.b16 %v88
    %v112 = vunpack.c.l.b16 %v89
    %v113 = vunpack.c.h.b16 %v89
    %v114 = vpack.c.b16 %v108, %v106
    %v115 = vpack.c.b16 %v109, %v107
    %v116 = vpack.c.b16 %v112, %v110
    %v117 = vpack.c.b16 %v113, %v111
    %vm122 = vcmask 261120
    %v124 = vsel %vm122, %v85, 0
    %126 = vmatprep.subr.bf16.mxu0 %v115
    %127 = vmatpush1.bf16.msra.mxu0 %v114
    %128 = vmatprep.subr.bf16.mxu0 %v117
    %129 = vmatpush1.bf16.msra.mxu0 %v116
    %130 = vmatprep.subr.bf16.mxu0 0
    %131 = vmatpush1.bf16.msra.mxu0 0
    %132 = vmatprep.subr.bf16.mxu0 0
    %133 = vmatpush1.bf16.msra.mxu0 0
    %134 = vmatprep.subr.bf16.mxu0 0
    %135 = vmatpush1.bf16.msra.mxu0 0
    %136 = vmatprep.subr.bf16.mxu0 0
    %137 = vmatpush1.bf16.msra.mxu0 0
    %138 = vmatprep.subr.bf16.mxu0 0
    %139 = vmatpush1.bf16.msra.mxu0 0
    %140 = vmatprep.subr.bf16.mxu0 0
    %141 = vmatpush1.bf16.msra.mxu0 0
    %142 = vmatprep.subr.bf16.mxu0 0
    %143 = vmatpush1.bf16.msra.mxu0 0
    %144 = vmatprep.subr.bf16.mxu0 0
    %145 = vmatpush1.bf16.msra.mxu0 0
    %146 = vmatprep.subr.bf16.mxu0 0
    %147 = vmatpush1.bf16.msra.mxu0 0
    %148 = vmatprep.subr.bf16.mxu0 0
    %149 = vmatpush1.bf16.msra.mxu0 0
    %150 = vmatprep.subr.bf16.mxu0 0
    %151 = vmatpush1.bf16.msra.mxu0 0
    %152 = vmatprep.subr.bf16.mxu0 0
    %153 = vmatpush1.bf16.msra.mxu0 0
    %154 = vmatprep.subr.bf16.mxu0 0
    %155 = vmatpush1.bf16.msra.mxu0 0
    %156 = vmatprep.subr.bf16.mxu0 0
    %157 = vmatpush1.bf16.msra.mxu0 0
    %158 = vmatprep.mubr.bf16.mxu0 0
    %159 = vmatmul.mubr.bf16.gmra.mrb[0].mxu0 %v124
    %v160 = vpop.f32.mrb[0].mxu0
    %v161 = vadd.f32 %v95, %v160
    %v162 = vpop.f32.mrb[0].mxu0
    %v163 = vadd.f32 %v99, %v162
    %v164 = vpop.f32.mrb[0].mxu0
    %v165 = vadd.f32 %v95, %v164
    %v166 = vpop.f32.mrb[0].mxu0
    %v167 = vadd.f32 %v99, %v166
    %168 = vdwg.mxu0
    %v169 = vmax.f32 %v161, 0.0
    %v170 = vmax.f32 %v163, 0.0
    %v171 = vmax.f32 %v165, 0.0
    %v172 = vmax.f32 %v167, 0.0
    %v173 = vpack.c.bf16 %v171, %v169
    %v174 = vpack.c.bf16 %v172, %v170
    %v175 = vld [vmem:[#allocation7] sm:$0xff]
    %v176 = vld [vmem:[#allocation7 + $0x8] sm:$0xff]
    %v177 = vld [vmem:[#allocation7 + $0x10] sm:$0xff]
    %v178 = vld [vmem:[#allocation7 + $0x18] sm:$0xff]
    %v179 = vld [vmem:[#allocation7 + $0x20] sm:$0xff]
    %v180 = vld [vmem:[#allocation7 + $0x28] sm:$0xff]
    %v181 = vld [vmem:[#allocation7 + $0x30] sm:$0xff]
    %v182 = vld [vmem:[#allocation7 + $0x38] sm:$0xff]
    %v183 = vld [vmem:[#allocation7 + $0x40] sm:$0xff]
    %v184 = vld [vmem:[#allocation7 + $0x48] sm:$0xff]
    %v185 = vld [vmem:[#allocation7 + $0x50] sm:$0xff]
    %v186 = vld [vmem:[#allocation7 + $0x58] sm:$0xff]
    %v187 = vld [vmem:[#allocation7 + $0x60] sm:$0xff]
    %v188 = vld [vmem:[#allocation7 + $0x68] sm:$0xff]
    %v189 = vld [vmem:[#allocation7 + $0x70] sm:$0xff]
    %v190 = vld [vmem:[#allocation7 + $0x78] sm:$0xff]
    %v191 = vld [vmem:[#allocation7 + $0x80] sm:$0xff]
    %v192 = vld [vmem:[#allocation7 + $0x88] sm:$0xff]
    %v193 = vld [vmem:[#allocation7 + $0x90] sm:$0xff]
    %v194 = vld [vmem:[#allocation7 + $0x98] sm:$0xff]
    %v195 = vld [vmem:[#allocation7 + $0xa0] sm:$0xff]
    %v196 = vld [vmem:[#allocation7 + $0xa8] sm:$0xff]
    %v197 = vld [vmem:[#allocation7 + $0xb0] sm:$0xff]
    %v198 = vld [vmem:[#allocation7 + $0xb8] sm:$0xff]
    %v199 = vld [vmem:[#allocation7 + $0xc0] sm:$0xff]
    %v200 = vld [vmem:[#allocation7 + $0xc8] sm:$0xff]
    %v201 = vld [vmem:[#allocation7 + $0xd0] sm:$0xff]
    %v202 = vld [vmem:[#allocation7 + $0xd8] sm:$0xff]
    %v203 = vld [vmem:[#allocation7 + $0xe0] sm:$0xff]
    %v204 = vld [vmem:[#allocation7 + $0xe8] sm:$0xff]
    %v205 = vld [vmem:[#allocation7 + $0xf0] sm:$0xff]
    %v206 = vld [vmem:[#allocation7 + $0xf8] sm:$0xff]
    %v207 = vld [vmem:[%s4] sm:$0x3]
    %v209 = vlaneseq
    %v210 = vshrl.u32 %v209, 7
    %v211 = vsub.s32 0, %v210
    %v212 = vrot.slane %v207, %v211
    %v213 = vlaneseq
    %v214 = vshrl.u32 %v213, 7
    %v215 = vsub.s32 1, %v214
    %v216 = vrot.slane %v207, %v215
    %v251 = vunpack.c.l.b16 %v175
    %v252 = vunpack.c.h.b16 %v175
    %v253 = vunpack.c.l.b16 %v176
    %v254 = vunpack.c.h.b16 %v176
    %v255 = vunpack.c.l.b16 %v177
    %v256 = vunpack.c.h.b16 %v177
    %v257 = vunpack.c.l.b16 %v178
    %v258 = vunpack.c.h.b16 %v178
    %v259 = vunpack.c.l.b16 %v179
    %v260 = vunpack.c.h.b16 %v179
    %v261 = vunpack.c.l.b16 %v180
    %v262 = vunpack.c.h.b16 %v180
    %v263 = vunpack.c.l.b16 %v181
    %v264 = vunpack.c.h.b16 %v181
    %v265 = vunpack.c.l.b16 %v182
    %v266 = vunpack.c.h.b16 %v182
    %v267 = vunpack.c.l.b16 %v183
    %v268 = vunpack.c.h.b16 %v183
    %v269 = vunpack.c.l.b16 %v184
    %v270 = vunpack.c.h.b16 %v184
    %v271 = vunpack.c.l.b16 %v185
    %v272 = vunpack.c.h.b16 %v185
    %v273 = vunpack.c.l.b16 %v186
    %v274 = vunpack.c.h.b16 %v186
    %v275 = vunpack.c.l.b16 %v187
    %v276 = vunpack.c.h.b16 %v187
    %v277 = vunpack.c.l.b16 %v188
    %v278 = vunpack.c.h.b16 %v188
    %v279 = vunpack.c.l.b16 %v189
    %v280 = vunpack.c.h.b16 %v189
    %v281 = vunpack.c.l.b16 %v190
    %v282 = vunpack.c.h.b16 %v190
    %v283 = vunpack.c.l.b16 %v191
    %v284 = vunpack.c.h.b16 %v191
    %v285 = vunpack.c.l.b16 %v192
    %v286 = vunpack.c.h.b16 %v192
    %v287 = vunpack.c.l.b16 %v193
    %v288 = vunpack.c.h.b16 %v193
    %v289 = vunpack.c.l.b16 %v194
    %v290 = vunpack.c.h.b16 %v194
    %v291 = vunpack.c.l.b16 %v195
    %v292 = vunpack.c.h.b16 %v195
    %v293 = vunpack.c.l.b16 %v196
    %v294 = vunpack.c.h.b16 %v196
    %v295 = vunpack.c.l.b16 %v197
    %v296 = vunpack.c.h.b16 %v197
    %v297 = vunpack.c.l.b16 %v198
    %v298 = vunpack.c.h.b16 %v198
    %v299 = vunpack.c.l.b16 %v199
    %v300 = vunpack.c.h.b16 %v199
    %v301 = vunpack.c.l.b16 %v200
    %v302 = vunpack.c.h.b16 %v200
    %v303 = vunpack.c.l.b16 %v201
    %v304 = vunpack.c.h.b16 %v201
    %v305 = vunpack.c.l.b16 %v202
    %v306 = vunpack.c.h.b16 %v202
    %v307 = vunpack.c.l.b16 %v203
    %v308 = vunpack.c.h.b16 %v203
    %v309 = vunpack.c.l.b16 %v204
    %v310 = vunpack.c.h.b16 %v204
    %v311 = vunpack.c.l.b16 %v205
    %v312 = vunpack.c.h.b16 %v205
    %v313 = vunpack.c.l.b16 %v206
    %v314 = vunpack.c.h.b16 %v206
    %v315 = vpack.c.b16 %v253, %v251
    %v316 = vpack.c.b16 %v254, %v252
    %v317 = vpack.c.b16 %v257, %v255
    %v318 = vpack.c.b16 %v258, %v256
    %v319 = vpack.c.b16 %v261, %v259
    %v320 = vpack.c.b16 %v262, %v260
    %v321 = vpack.c.b16 %v265, %v263
    %v322 = vpack.c.b16 %v266, %v264
    %v323 = vpack.c.b16 %v269, %v267
    %v324 = vpack.c.b16 %v270, %v268
    %v325 = vpack.c.b16 %v273, %v271
    %v326 = vpack.c.b16 %v274, %v272
    %v327 = vpack.c.b16 %v277, %v275
    %v328 = vpack.c.b16 %v278, %v276
    %v329 = vpack.c.b16 %v281, %v279
    %v330 = vpack.c.b16 %v282, %v280
    %v331 = vpack.c.b16 %v285, %v283
    %v332 = vpack.c.b16 %v286, %v284
    %v333 = vpack.c.b16 %v289, %v287
    %v334 = vpack.c.b16 %v290, %v288
    %v335 = vpack.c.b16 %v293, %v291
    %v336 = vpack.c.b16 %v294, %v292
    %v337 = vpack.c.b16 %v297, %v295
    %v338 = vpack.c.b16 %v298, %v296
    %v339 = vpack.c.b16 %v301, %v299
    %v340 = vpack.c.b16 %v302, %v300
    %v341 = vpack.c.b16 %v305, %v303
    %v342 = vpack.c.b16 %v306, %v304
    %v343 = vpack.c.b16 %v309, %v307
    %v344 = vpack.c.b16 %v310, %v308
    %v345 = vpack.c.b16 %v313, %v311
    %v346 = vpack.c.b16 %v314, %v312
    %379 = vmatprep.subr.bf16.mxu0 %v316
    %380 = vmatpush1.bf16.msra.mxu0 %v315
    %381 = vmatprep.subr.bf16.mxu0 %v318
    %382 = vmatpush1.bf16.msra.mxu0 %v317
    %383 = vmatprep.subr.bf16.mxu0 %v320
    %384 = vmatpush1.bf16.msra.mxu0 %v319
    %385 = vmatprep.subr.bf16.mxu0 %v322
    %386 = vmatpush1.bf16.msra.mxu0 %v321
    %387 = vmatprep.subr.bf16.mxu0 %v324
    %388 = vmatpush1.bf16.msra.mxu0 %v323
    %389 = vmatprep.subr.bf16.mxu0 %v326
    %390 = vmatpush1.bf16.msra.mxu0 %v325
    %391 = vmatprep.subr.bf16.mxu0 %v328
    %392 = vmatpush1.bf16.msra.mxu0 %v327
    %393 = vmatprep.subr.bf16.mxu0 %v330
    %394 = vmatpush1.bf16.msra.mxu0 %v329
    %395 = vmatprep.subr.bf16.mxu0 %v332
    %396 = vmatpush1.bf16.msra.mxu0 %v331
    %397 = vmatprep.subr.bf16.mxu0 %v334
    %398 = vmatpush1.bf16.msra.mxu0 %v333
    %399 = vmatprep.subr.bf16.mxu0 %v336
    %400 = vmatpush1.bf16.msra.mxu0 %v335
    %401 = vmatprep.subr.bf16.mxu0 %v338
    %402 = vmatpush1.bf16.msra.mxu0 %v337
    %403 = vmatprep.subr.bf16.mxu0 %v340
    %404 = vmatpush1.bf16.msra.mxu0 %v339
    %405 = vmatprep.subr.bf16.mxu0 %v342
    %406 = vmatpush1.bf16.msra.mxu0 %v341
    %407 = vmatprep.subr.bf16.mxu0 %v344
    %408 = vmatpush1.bf16.msra.mxu0 %v343
    %409 = vmatprep.subr.bf16.mxu0 %v346
    %410 = vmatpush1.bf16.msra.mxu0 %v345
    %411 = vmatprep.mubr.bf16.mxu0 %v174
    %412 = vmatmul.mubr.bf16.gmra.mrb[0].mxu0 %v173
    %v413 = vpop.f32.mrb[0].mxu0
    %v414 = vadd.f32 %v212, %v413
    %v415 = vpop.f32.mrb[0].mxu0
    %v416 = vadd.f32 %v216, %v415
    %v417 = vpop.f32.mrb[0].mxu0
    %v418 = vadd.f32 %v212, %v417
    %v419 = vpop.f32.mrb[0].mxu0
    %v420 = vadd.f32 %v216, %v419
    %421 = vdwg.mxu0
    %v422 = vmax.f32 %v414, 0.0
    %v423 = vmax.f32 %v416, 0.0
    %v424 = vmax.f32 %v418, 0.0
    %v425 = vmax.f32 %v420, 0.0
    %v426 = vpack.c.bf16 %v424, %v422
    %v427 = vpack.c.bf16 %v425, %v423
    %v428 = vld [vmem:[#allocation8] sm:$0xf]
    %v429 = vld [vmem:[#allocation8 + $0x4] sm:$0xf]
    %v430 = vld [vmem:[#allocation8 + $0x8] sm:$0xf]
    %v431 = vld [vmem:[#allocation8 + $0xc] sm:$0xf]
    %v432 = vld [vmem:[#allocation8 + $0x10] sm:$0xf]
    %v433 = vld [vmem:[#allocation8 + $0x14] sm:$0xf]
    %v434 = vld [vmem:[#allocation8 + $0x18] sm:$0xf]
    %v435 = vld [vmem:[#allocation8 + $0x1c] sm:$0xf]
    %v436 = vld [vmem:[#allocation8 + $0x20] sm:$0xf]
    %v437 = vld [vmem:[#allocation8 + $0x24] sm:$0xf]
    %v438 = vld [vmem:[#allocation8 + $0x28] sm:$0xf]
    %v439 = vld [vmem:[#allocation8 + $0x2c] sm:$0xf]
    %v440 = vld [vmem:[#allocation8 + $0x30] sm:$0xf]
    %v441 = vld [vmem:[#allocation8 + $0x34] sm:$0xf]
    %v442 = vld [vmem:[#allocation8 + $0x38] sm:$0xf]
    %v443 = vld [vmem:[#allocation8 + $0x3c] sm:$0xf]
    %v444 = vld [vmem:[#allocation8 + $0x40] sm:$0xf]
    %v445 = vld [vmem:[#allocation8 + $0x44] sm:$0xf]
    %v446 = vld [vmem:[#allocation8 + $0x48] sm:$0xf]
    %v447 = vld [vmem:[#allocation8 + $0x4c] sm:$0xf]
    %v448 = vld [vmem:[#allocation8 + $0x50] sm:$0xf]
    %v449 = vld [vmem:[#allocation8 + $0x54] sm:$0xf]
    %v450 = vld [vmem:[#allocation8 + $0x58] sm:$0xf]
    %v451 = vld [vmem:[#allocation8 + $0x5c] sm:$0xf]
    %v452 = vld [vmem:[#allocation8 + $0x60] sm:$0xf]
    %v453 = vld [vmem:[#allocation8 + $0x64] sm:$0xf]
    %v454 = vld [vmem:[#allocation8 + $0x68] sm:$0xf]
    %v455 = vld [vmem:[#allocation8 + $0x6c] sm:$0xf]
    %v456 = vld [vmem:[#allocation8 + $0x70] sm:$0xf]
    %v457 = vld [vmem:[#allocation8 + $0x74] sm:$0xf]
    %v458 = vld [vmem:[#allocation8 + $0x78] sm:$0xf]
    %v459 = vld [vmem:[#allocation8 + $0x7c] sm:$0xf]
    %v460 = vld [vmem:[%s6] sm:$0x1]
    %v462 = vlaneseq
    %v463 = vshrl.u32 %v462, 7
    %v464 = vsub.s32 0, %v463
    %v465 = vrot.slane %v460, %v464
    %v499 = vunpack.c.l.b16 %v428
    %v500 = vunpack.c.l.b16 %v429
    %v501 = vunpack.c.l.b16 %v430
    %v502 = vunpack.c.l.b16 %v431
    %v503 = vunpack.c.l.b16 %v432
    %v504 = vunpack.c.l.b16 %v433
    %v505 = vunpack.c.l.b16 %v434
    %v506 = vunpack.c.l.b16 %v435
    %v507 = vunpack.c.l.b16 %v436
    %v508 = vunpack.c.l.b16 %v437
    %v509 = vunpack.c.l.b16 %v438
    %v510 = vunpack.c.l.b16 %v439
    %v511 = vunpack.c.l.b16 %v440
    %v512 = vunpack.c.l.b16 %v441
    %v513 = vunpack.c.l.b16 %v442
    %v514 = vunpack.c.l.b16 %v443
    %v515 = vunpack.c.l.b16 %v444
    %v516 = vunpack.c.l.b16 %v445
    %v517 = vunpack.c.l.b16 %v446
    %v518 = vunpack.c.l.b16 %v447
    %v519 = vunpack.c.l.b16 %v448
    %v520 = vunpack.c.l.b16 %v449
    %v521 = vunpack.c.l.b16 %v450
    %v522 = vunpack.c.l.b16 %v451
    %v523 = vunpack.c.l.b16 %v452
    %v524 = vunpack.c.l.b16 %v453
    %v525 = vunpack.c.l.b16 %v454
    %v526 = vunpack.c.l.b16 %v455
    %v527 = vunpack.c.l.b16 %v456
    %v528 = vunpack.c.l.b16 %v457
    %v529 = vunpack.c.l.b16 %v458
    %v530 = vunpack.c.l.b16 %v459
    %v531 = vpack.c.b16 %v500, %v499
    %v532 = vpack.c.b16 %v502, %v501
    %v533 = vpack.c.b16 %v504, %v503
    %v534 = vpack.c.b16 %v506, %v505
    %v535 = vpack.c.b16 %v508, %v507
    %v536 = vpack.c.b16 %v510, %v509
    %v537 = vpack.c.b16 %v512, %v511
    %v538 = vpack.c.b16 %v514, %v513
    %v539 = vpack.c.b16 %v516, %v515
    %v540 = vpack.c.b16 %v518, %v517
    %v541 = vpack.c.b16 %v520, %v519
    %v542 = vpack.c.b16 %v522, %v521
    %v543 = vpack.c.b16 %v524, %v523
    %v544 = vpack.c.b16 %v526, %v525
    %v545 = vpack.c.b16 %v528, %v527
    %v546 = vpack.c.b16 %v530, %v529
    %563 = vmatprep.subr.bf16.mxu0 0
    %564 = vmatpush1.bf16.msra.mxu0 %v531
    %565 = vmatprep.subr.bf16.mxu0 0
    %566 = vmatpush1.bf16.msra.mxu0 %v532
    %567 = vmatprep.subr.bf16.mxu0 0
    %568 = vmatpush1.bf16.msra.mxu0 %v533
    %569 = vmatprep.subr.bf16.mxu0 0
    %570 = vmatpush1.bf16.msra.mxu0 %v534
    %571 = vmatprep.subr.bf16.mxu0 0
    %572 = vmatpush1.bf16.msra.mxu0 %v535
    %573 = vmatprep.subr.bf16.mxu0 0
    %574 = vmatpush1.bf16.msra.mxu0 %v536
    %575 = vmatprep.subr.bf16.mxu0 0
    %576 = vmatpush1.bf16.msra.mxu0 %v537
    %577 = vmatprep.subr.bf16.mxu0 0
    %578 = vmatpush1.bf16.msra.mxu0 %v538
    %579 = vmatprep.subr.bf16.mxu0 0
    %580 = vmatpush1.bf16.msra.mxu0 %v539
    %581 = vmatprep.subr.bf16.mxu0 0
    %582 = vmatpush1.bf16.msra.mxu0 %v540
    %583 = vmatprep.subr.bf16.mxu0 0
    %584 = vmatpush1.bf16.msra.mxu0 %v541
    %585 = vmatprep.subr.bf16.mxu0 0
    %586 = vmatpush1.bf16.msra.mxu0 %v542
    %587 = vmatprep.subr.bf16.mxu0 0
    %588 = vmatpush1.bf16.msra.mxu0 %v543
    %589 = vmatprep.subr.bf16.mxu0 0
    %590 = vmatpush1.bf16.msra.mxu0 %v544
    %591 = vmatprep.subr.bf16.mxu0 0
    %592 = vmatpush1.bf16.msra.mxu0 %v545
    %593 = vmatprep.subr.bf16.mxu0 0
    %594 = vmatpush1.bf16.msra.mxu0 %v546
    %595 = vmatprep.mubr.bf16.mxu0 %v427
    %596 = vmatmul.mubr.bf16.gmra.mrb[0].mxu0 %v426
    %v597 = vpop.f32.mrb[0].mxu0
    %v598 = vadd.f32 %v465, %v597
    %v599 = vpop.f32.mrb[0].mxu0
    %v600 = vpop.f32.mrb[0].mxu0
    %v601 = vadd.f32 %v465, %v600
    %v602 = vpop.f32.mrb[0].mxu0
    %603 = vdwg.mxu0
    %604 = vst [vmem:[#allocation10] sm:$0xff] %v598
    %605 = vst [vmem:[#allocation10 + $0x8] sm:$0xff] %v601
    // Predicated region
    $region46: #{tpu_custom_call.1} parent=1 // pred_check
      _
    $region47: #{tpu_custom_call.1} parent=1 // pred_check_branch
      %607 = sbr.rel (0) target = $region49
    $region48: #{tpu_custom_call.1} parent=1 // pred_region
      %s609 = ssub.s32 256, 256
      %610 = vsyncadd [#allocation4], %s609
      %s611 = sshll.u32 [#allocation10], 4
      %s612 = int_to_ptr.vmem [resolvable:$true] %s611
      %617 = dma.vmem_to_hbm [thread:$0]  %s612, 256, %s7, [#allocation4], 128, 128, 8
    $region49: #{tpu_custom_call.1} parent=1 // pred_fallthru
      _
    // Predicated region
    $region50: #{tpu_custom_call.1} parent=1 // pred_check
      _
    $region51: #{tpu_custom_call.1} parent=1 // pred_check_branch
      %619 = sbr.rel (0) target = $region53
    $region52: #{tpu_custom_call.1} parent=1 // pred_region
      %620 = dma.done [#allocation4], 256
    $region53: #{tpu_custom_call.1} parent=1 // pred_fallthru
      _
    %621 = vsyncpa [#allocation3], 1
    %622 = vsyncpa [#allocation6], 1
    %623 = vsyncpa [#allocation9], 1
    %624 = vsyncpa [#allocation4], 1

</llo_original>
